<compile_context>
chip_gen: v6e
topology: v6e:2x2x1
jax: 0.10.0
libtpu: 0.0.40
codegen_flags: <defaults>
</compile_context>

<pallas_src>
import jax
import jax.numpy as jnp
from jax.experimental import pallas as pl
from jax.experimental.pallas import tpu as pltpu


_TM_CAP = 1024  # packed rows per grid step (= 4096 original rows when pack=4)


# ---------------------------------------------------------------------------
# Kernel
# ---------------------------------------------------------------------------
def sd1_kernel(x_ref, w1_ref, b_ref, w2_ref, o_ref):
    # x_ref : (tm, pack*Nin)        packed rows (pack original rows per packed row)
    # w1_ref: (pack*Nin, pack*Nhid) block-diagonal W1^T (VMEM-resident)
    # b_ref : (1, pack*Nhid)        bias tiled `pack` times
    # w2_ref: (pack*Nhid, pack*2)   block-diagonal [Ws2^T | Wd2^T]
    # o_ref : (tm, pack*2)          packed [o_s, o_d] per original row
    h = jnp.dot(x_ref[...], w1_ref[...], preferred_element_type=jnp.float32)
    h = jax.nn.sigmoid(h + b_ref[...].astype(jnp.float32))
    o_ref[...] = jnp.dot(
        h, w2_ref[...], preferred_element_type=jnp.float32
    ).astype(o_ref.dtype)


# ---------------------------------------------------------------------------
# Parameter prep (done ONCE, outside the forward path)
# ---------------------------------------------------------------------------
def prepare_params(W1, B, Ws2, Wd2):
    """W1: (Nhid, Nin); B: (Nhid,); Ws2, Wd2: (1, Nhid) -> packed VMEM-resident slabs."""
    nhid, nin = W1.shape
    # Lane-packing factor: pack `pack` original rows into one 128-wide packed row.
    pack = (128 // nin) if (nin < 128 and 128 % nin == 0) else 1

    w1t = W1.T                                         # (Nin, Nhid)
    w2 = jnp.concatenate([Ws2.T, Wd2.T], axis=1)       # (Nhid, 2): cols = [s, d]

    def blockdiag(m, p):
        r, c = m.shape
        out = jnp.zeros((p * r, p * c), m.dtype)
        for g in range(p):
            out = out.at[g * r:(g + 1) * r, g * c:(g + 1) * c].set(m)
        return out

    w1p = blockdiag(w1t, pack)                         # (pack*Nin, pack*Nhid)
    w2p = blockdiag(w2, pack)                          # (pack*Nhid, pack*2)
    bp = jnp.tile(B.reshape(1, nhid), (1, pack))       # (1, pack*Nhid)
    return w1p, bp, w2p


# ---------------------------------------------------------------------------
# Forward (jitted wrapper: pad-to-pack, packed view, pallas_call, un-pack)
# ---------------------------------------------------------------------------
@jax.jit
def sd1_forward(x, w1p, bp, w2p):
    """x: (batch, Nin). Returns (o_s, o_d), each shape (batch,)."""
    batch, nin = x.shape
    pack = w1p.shape[0] // nin
    nhid_p = w1p.shape[1]           # pack * Nhid
    nout_p = w2p.shape[1]           # pack * 2

    # Pad batch only to a multiple of `pack` (no-op for batch % pack == 0);
    # the per-TM padding of the old version is gone (partial last block instead).
    b_pad = ((batch + pack - 1) // pack) * pack
    if b_pad != batch:
        x = jnp.pad(x, ((0, b_pad - batch), (0, 0)))
    rows = b_pad // pack
    xp = x.reshape(rows, pack * nin)        # layout-preserving view, free

    # Row-tile selection: full array as one block when small, else a fixed cap
    # (multiple of 8) with a partial, OOB-masked final block.
    tm = rows if rows <= _TM_CAP else _TM_CAP
    grid = (pl.cdiv(rows, tm),)

    # VMEM budget from the actual footprint (x/out double-buffered, h temp,
    # resident weights) + headroom; clamp <= 32 MiB so it is safe on v7x too.
    vmem_bytes = (2 * tm * pack * nin * 4 + 2 * tm * nout_p * 4
                  + tm * nhid_p * 4
                  + 2 * (pack * nin * nhid_p + nhid_p + nhid_p * nout_p) * 4
                  + (8 << 20))
    vmem_bytes = int(min(max(vmem_bytes, 16 << 20), 32 << 20))

    out_p = pl.pallas_call(
        sd1_kernel,
        out_shape=jax.ShapeDtypeStruct((rows, nout_p), jnp.float32),
        grid_spec=pltpu.PrefetchScalarGridSpec(
            num_scalar_prefetch=0,
            grid=grid,
            in_specs=[
                pl.BlockSpec((tm, pack * nin), lambda i: (i, 0)),   # x: streamed
                pl.BlockSpec((pack * nin, nhid_p), lambda i: (0, 0)),  # W1p: resident
                pl.BlockSpec((1, nhid_p), lambda i: (0, 0)),           # bias: resident
                pl.BlockSpec((nhid_p, nout_p), lambda i: (0, 0)),      # W2p: resident
            ],
            out_specs=pl.BlockSpec((tm, nout_p), lambda i: (i, 0)),
        ),
        compiler_params=pltpu.CompilerParams(
            dimension_semantics=("parallel",),   # v7x: shard batch steps over 2 TCs
            vmem_limit_bytes=vmem_bytes,
        ),
    )(xp, w1p, bp, w2p)

    out = out_p.reshape(rows * pack, 2)      # free un-pack back to (b_pad, 2)
    return out[:batch, 0], out[:batch, 1]


# ---------------------------------------------------------------------------
# Self-test
# ---------------------------------------------------------------------------
if __name__ == "__main__":
    key = jax.random.PRNGKey(0)
    k_x, k_w1, k_b, k_ws2, k_wd2, k_x2, k_x3 = jax.random.split(key, 7)

    Nin, Nhid_prime = 32, 32
    W1 = jax.random.normal(k_w1, (Nhid_prime, Nin), dtype=jnp.float32) * 0.1
    B = jax.random.normal(k_b, (Nhid_prime,), dtype=jnp.float32) * 0.1
    Ws2 = jax.random.normal(k_ws2, (1, Nhid_prime), dtype=jnp.float32) * 0.1
    Wd2 = jax.random.normal(k_wd2, (1, Nhid_prime), dtype=jnp.float32) * 0.1
    w1p, bp, w2p = prepare_params(W1, B, Ws2, Wd2)

    def reference(x):
        h = jax.nn.sigmoid(x @ W1.T + B)
        return (h @ Ws2.T).squeeze(), (h @ Wd2.T).squeeze()

    # (1) small batch matching the toy module instantiation
    x_small = jax.random.normal(k_x, (8, Nin), dtype=jnp.float32)
    o_s, o_d = sd1_forward(x_small, w1p, bp, w2p)
    jax.block_until_ready((o_s, o_d))
    os_ref, od_ref = reference(x_small)
    assert jnp.allclose(o_s, os_ref, atol=1e-5), "o_s mismatch (small batch)"
    assert jnp.allclose(o_d, od_ref, atol=1e-5), "o_d mismatch (small batch)"

    # (2) ragged batch (batch % 4 != 0): exercises the pack-padding path
    x_big = jax.random.normal(k_x2, (1037, Nin), dtype=jnp.float32)
    o_s2, o_d2 = sd1_forward(x_big, w1p, bp, w2p)
    jax.block_until_ready((o_s2, o_d2))
    os_ref2, od_ref2 = reference(x_big)
    assert jnp.allclose(o_s2, os_ref2, atol=1e-5), "o_s mismatch (ragged batch)"
    assert jnp.allclose(o_d2, od_ref2, atol=1e-5), "o_d mismatch (ragged batch)"

    # (3) batch large enough for a 2-step grid with a partial (OOB-masked) last block
    x_grid = jax.random.normal(k_x3, (4100, Nin), dtype=jnp.float32)
    o_s3, o_d3 = sd1_forward(x_grid, w1p, bp, w2p)
    jax.block_until_ready((o_s3, o_d3))
    os_ref3, od_ref3 = reference(x_grid)
    assert jnp.allclose(o_s3, os_ref3, atol=1e-5), "o_s mismatch (gridded batch)"
    assert jnp.allclose(o_d3, od_ref3, atol=1e-5), "o_d mismatch (gridded batch)"

    print("KERNEL_OK")
</pallas_src>

<mosaic_0001>
module attributes {stable_mosaic.version = 11 : i64} {
  func.func @sd1_kernel(%arg0: i32, %arg1: memref<2x128xf32, #tpu.memory_space<vmem>>, %arg2: memref<128x128xf32, #tpu.memory_space<vmem>>, %arg3: memref<1x128xf32, #tpu.memory_space<vmem>>, %arg4: memref<128x8xf32, #tpu.memory_space<vmem>>, %arg5: memref<2x8xf32, #tpu.memory_space<vmem>>) attributes {dimension_semantics = [#tpu.dimension_semantics<parallel>], iteration_bounds = array<i64: 1>, scalar_prefetch = 0 : i64, scratch_operands = 0 : i64, tpu.core_type = #tpu.core_type<tc>, window_params = [{transform_indices = @transform_0, window_bounds = array<i64: 2, 128>}, {pipeline_mode = #tpu.pipeline_mode<synchronous>, transform_indices = @transform_1, window_bounds = array<i64: 128, 128>}, {pipeline_mode = #tpu.pipeline_mode<synchronous>, transform_indices = @transform_2, window_bounds = array<i64: 1, 128>}, {pipeline_mode = #tpu.pipeline_mode<synchronous>, transform_indices = @transform_3, window_bounds = array<i64: 128, 8>}, {transform_indices = @transform_4, window_bounds = array<i64: 2, 8>}]} {
    %c0 = arith.constant 0 : index
    %c0_0 = arith.constant 0 : index
    %0 = vector.load %arg1[%c0, %c0_0] : memref<2x128xf32, #tpu.memory_space<vmem>>, vector<2x128xf32>
    %c0_1 = arith.constant 0 : index
    %c0_2 = arith.constant 0 : index
    %1 = vector.load %arg2[%c0_1, %c0_2] : memref<128x128xf32, #tpu.memory_space<vmem>>, vector<128x128xf32>
    %cst = arith.constant dense<0.000000e+00> : vector<2x128xf32>
    %2 = tpu.matmul %0, %1, %cst {dimension_numbers = #tpu.dot_dimension_numbers<[1], [0], [0], [1], [0, 0, 1, 1], [], []>} : vector<2x128xf32>, vector<128x128xf32>, vector<2x128xf32> -> vector<2x128xf32>
    %c0_3 = arith.constant 0 : index
    %c0_4 = arith.constant 0 : index
    %3 = vector.load %arg3[%c0_3, %c0_4] : memref<1x128xf32, #tpu.memory_space<vmem>>, vector<1x128xf32>
    %4 = vector.broadcast %3 : vector<1x128xf32> to vector<2x128xf32>
    %5 = arith.addf %2, %4 : vector<2x128xf32>
    %6 = arith.negf %5 : vector<2x128xf32>
    %7 = math.exp %6 : vector<2x128xf32>
    %cst_5 = arith.constant 1.000000e+00 : f32
    %8 = vector.broadcast %cst_5 : f32 to vector<2x128xf32>
    %9 = arith.addf %8, %7 : vector<2x128xf32>
    %10 = arith.divf %8, %9 : vector<2x128xf32>
    %c0_6 = arith.constant 0 : index
    %c0_7 = arith.constant 0 : index
    %11 = vector.load %arg4[%c0_6, %c0_7] : memref<128x8xf32, #tpu.memory_space<vmem>>, vector<128x8xf32>
    %cst_8 = arith.constant dense<0.000000e+00> : vector<2x8xf32>
    %12 = tpu.matmul %10, %11, %cst_8 {dimension_numbers = #tpu.dot_dimension_numbers<[1], [0], [0], [1], [0, 0, 1, 1], [], []>} : vector<2x128xf32>, vector<128x8xf32>, vector<2x8xf32> -> vector<2x8xf32>
    %c0_9 = arith.constant 0 : index
    %c0_10 = arith.constant 0 : index
    %13 = vector.load %arg5[%c0_9, %c0_10] : memref<2x8xf32, #tpu.memory_space<vmem>>, vector<2x8xf32>
    tpu.vector_store %arg5[%c0_9, %c0_10], %12 {strides = array<i32>} : memref<2x8xf32, #tpu.memory_space<vmem>>, vector<2x8xf32>,
    return
  }
  func.func @transform_0(%arg0: i32) -> (i32, i32) {
    %c0_i32 = arith.constant 0 : i32
    %c0_i32_0 = arith.constant 0 : i32
    return %arg0, %c0_i32 : i32, i32
  }
  func.func @transform_1(%arg0: i32) -> (i32, i32) {
    %c0_i32 = arith.constant 0 : i32
    %c0_i32_0 = arith.constant 0 : i32
    %c0_i32_1 = arith.constant 0 : i32
    return %c0_i32, %c0_i32_0 : i32, i32
  }
  func.func @transform_2(%arg0: i32) -> (i32, i32) {
    %c0_i32 = arith.constant 0 : i32
    %c0_i32_0 = arith.constant 0 : i32
    %c0_i32_1 = arith.constant 0 : i32
    return %c0_i32, %c0_i32_0 : i32, i32
  }
  func.func @transform_3(%arg0: i32) -> (i32, i32) {
    %c0_i32 = arith.constant 0 : i32
    %c0_i32_0 = arith.constant 0 : i32
    %c0_i32_1 = arith.constant 0 : i32
    return %c0_i32, %c0_i32_0 : i32, i32
  }
  func.func @transform_4(%arg0: i32) -> (i32, i32) {
    %c0_i32 = arith.constant 0 : i32
    %c0_i32_0 = arith.constant 0 : i32
    return %arg0, %c0_i32 : i32, i32
  }
}

</mosaic_0001>

<llo_original>
// kernel: sd1_forward.1
$region0: #{sd1_forward.1}
  #allocation0 [shape = 'u32[]', space=smem, size = 0x4, offset = 0x4, fixed_abs, tag = 'smem constant byte address 0x4 - core index']
  #allocation1 [shape = 'u32[144,128]{1,0:T(1,128)}', space=vmem, size = 0x12000, scoped, tag = 'internal scratch']
  %s0 = inlined_call_operand.vmem [shape: f32[2,128], index: 0, kind: input, shape index: {}]
  %s1 = inlined_call_operand.vmem [shape: f32[128,128], index: 1, kind: input, shape index: {}]
  %s2 = inlined_call_operand.vmem [shape: f32[1,128], index: 2, kind: input, shape index: {}]
  %s3 = inlined_call_operand.vmem [shape: f32[128,8], index: 3, kind: input, shape index: {}]
  %s4 = inlined_call_operand.vmem [shape: f32[2,8], index: 4, kind: output, shape index: {}]
  %s5 = sld [smem:[#allocation0]]
  $region26: #{sd1_forward.1} parent=0
    _
  %s7 = ssub.s32 1, %s5
  %s8 = scalar_select 0, %s7, %s5
  // Predicated region
  $region2: #{sd1_forward.1} parent=0 // pred_check
    _
  $region3: #{sd1_forward.1} parent=0 // pred_check_branch
    %10 = sbr.rel (0) target = $region5
  $region4: #{sd1_forward.1} parent=0 // pred_region
    _
  $region5: #{sd1_forward.1} parent=0 // pred_fallthru
    _
  // Predicated region
  $region6: #{sd1_forward.1} parent=0 // pred_check
    _
  $region7: #{sd1_forward.1} parent=0 // pred_check_branch
    %12 = sbr.rel (0) target = $region9
  $region8: #{sd1_forward.1} parent=0 // pred_region
    _
  $region9: #{sd1_forward.1} parent=0 // pred_fallthru
    _
  // Predicated region
  $region10: #{sd1_forward.1} parent=0 // pred_check
    _
  $region11: #{sd1_forward.1} parent=0 // pred_check_branch
    %14 = sbr.rel (0) target = $region13
  $region12: #{sd1_forward.1} parent=0 // pred_region
    _
  $region13: #{sd1_forward.1} parent=0 // pred_fallthru
    _
  // Predicated region
  $region14: #{sd1_forward.1} parent=0 // pred_check
    _
  $region15: #{sd1_forward.1} parent=0 // pred_check_branch
    %16 = sbr.rel (0) target = $region17
  $region16: #{sd1_forward.1} parent=0 // pred_region
    _
  $region17: #{sd1_forward.1} parent=0 // pred_fallthru
    _
  %v17 = vld [vmem:[%s0] sm:$0x3]
  %v18 = vld [vmem:[%s1] sm:$0xff]
  %v19 = vld [vmem:[%s1 + $0x8] sm:$0xff]
  %v20 = vld [vmem:[%s1 + $0x10] sm:$0xff]
  %v21 = vld [vmem:[%s1 + $0x18] sm:$0xff]
  %v22 = vld [vmem:[%s1 + $0x20] sm:$0xff]
  %v23 = vld [vmem:[%s1 + $0x28] sm:$0xff]
  %v24 = vld [vmem:[%s1 + $0x30] sm:$0xff]
  %v25 = vld [vmem:[%s1 + $0x38] sm:$0xff]
  %v26 = vld [vmem:[%s1 + $0x40] sm:$0xff]
  %v27 = vld [vmem:[%s1 + $0x48] sm:$0xff]
  %v28 = vld [vmem:[%s1 + $0x50] sm:$0xff]
  %v29 = vld [vmem:[%s1 + $0x58] sm:$0xff]
  %v30 = vld [vmem:[%s1 + $0x60] sm:$0xff]
  %v31 = vld [vmem:[%s1 + $0x68] sm:$0xff]
  %v32 = vld [vmem:[%s1 + $0x70] sm:$0xff]
  %v33 = vld [vmem:[%s1 + $0x78] sm:$0xff]
  %v34 = vld [vmem:[%s2] sm:$0x1]
  %v36 = vlaneseq
  %v37 = vshrl.u32 %v36, 7
  %v38 = vsub.s32 0, %v37
  %v39 = vrot.slane %v34, %v38
  %41 = vmatprep.subr.mxu0 0.0
  %42 = vmatpush1.msra.mxu0 %v33
  %43 = vmatprep.subr.mxu0 0.0
  %44 = vmatpush1.msra.mxu0 %v32
  %45 = vmatprep.subr.mxu0 0.0
  %46 = vmatpush1.msra.mxu0 %v31
  %47 = vmatprep.subr.mxu0 0.0
  %48 = vmatpush1.msra.mxu0 %v30
  %49 = vmatprep.subr.mxu0 0.0
  %50 = vmatpush1.msra.mxu0 %v29
  %51 = vmatprep.subr.mxu0 0.0
  %52 = vmatpush1.msra.mxu0 %v28
  %53 = vmatprep.subr.mxu0 0.0
  %54 = vmatpush1.msra.mxu0 %v27
  %55 = vmatprep.subr.mxu0 0.0
  %56 = vmatpush1.msra.mxu0 %v26
  %57 = vmatprep.subr.mxu0 0.0
  %58 = vmatpush1.msra.mxu0 %v25
  %59 = vmatprep.subr.mxu0 0.0
  %60 = vmatpush1.msra.mxu0 %v24
  %61 = vmatprep.subr.mxu0 0.0
  %62 = vmatpush1.msra.mxu0 %v23
  %63 = vmatprep.subr.mxu0 0.0
  %64 = vmatpush1.msra.mxu0 %v22
  %65 = vmatprep.subr.mxu0 0.0
  %66 = vmatpush1.msra.mxu0 %v21
  %67 = vmatprep.subr.mxu0 0.0
  %68 = vmatpush1.msra.mxu0 %v20
  %69 = vmatprep.subr.mxu0 0.0
  %70 = vmatpush1.msra.mxu0 %v19
  %71 = vmatprep.subr.mxu0 0.0
  %72 = vmatpush1.msra.mxu0 %v18
  %73 = vmatprep.subr.mxu0 0.0
  %74 = vmatpush2.msra.mxu0 0.0
  %75 = vmatprep.subr.mxu0 0.0
  %76 = vmatpush2.msra.mxu0 0.0
  %77 = vmatprep.subr.mxu0 0.0
  %78 = vmatpush2.msra.mxu0 0.0
  %79 = vmatprep.subr.mxu0 0.0
  %80 = vmatpush2.msra.mxu0 0.0
  %81 = vmatprep.subr.mxu0 0.0
  %82 = vmatpush2.msra.mxu0 0.0
  %83 = vmatprep.subr.mxu0 0.0
  %84 = vmatpush2.msra.mxu0 0.0
  %85 = vmatprep.subr.mxu0 0.0
  %86 = vmatpush2.msra.mxu0 0.0
  %87 = vmatprep.subr.mxu0 0.0
  %88 = vmatpush2.msra.mxu0 0.0
  %89 = vmatprep.subr.mxu0 0.0
  %90 = vmatpush2.msra.mxu0 0.0
  %91 = vmatprep.subr.mxu0 0.0
  %92 = vmatpush2.msra.mxu0 0.0
  %93 = vmatprep.subr.mxu0 0.0
  %94 = vmatpush2.msra.mxu0 0.0
  %95 = vmatprep.subr.mxu0 0.0
  %96 = vmatpush2.msra.mxu0 0.0
  %97 = vmatprep.subr.mxu0 0.0
  %98 = vmatpush2.msra.mxu0 0.0
  %99 = vmatprep.subr.mxu0 0.0
  %100 = vmatpush2.msra.mxu0 0.0
  %101 = vmatprep.subr.mxu0 0.0
  %102 = vmatpush2.msra.mxu0 0.0
  %103 = vmatprep.subr.mxu0 0.0
  %104 = vmatpush2.msra.mxu0 0.0
  %105 = vmatprep.mubr.f32.mxu0 0.0
  %106 = vmatmul.mubr.f32.gmra.mxu0 %v17
  %v107 = vpop.f32.mrf.mxu0
  %v108 = vadd.f32 %v39, %v107
  %v109 = vpop.f32.mrf.mxu0
  %110 = vdwg.mxu0
  %v111 = vxor.u32 %v108, 2147483648
  %v112 = vmul.f32 %v111, 1.442695
  %v113 = vpow.pop %v112
  %v114 = vadd.f32 %v113, 1.0
  %v115 = vrcp.pop %v114
  %v116 = vmul.f32 1.0, %v115
  %v117 = vld [vmem:[%s3] sm:$0xff]
  %v118 = vld [vmem:[%s3 + $0x8] sm:$0xff]
  %v119 = vld [vmem:[%s3 + $0x10] sm:$0xff]
  %v120 = vld [vmem:[%s3 + $0x18] sm:$0xff]
  %v121 = vld [vmem:[%s3 + $0x20] sm:$0xff]
  %v122 = vld [vmem:[%s3 + $0x28] sm:$0xff]
  %v123 = vld [vmem:[%s3 + $0x30] sm:$0xff]
  %v124 = vld [vmem:[%s3 + $0x38] sm:$0xff]
  %v125 = vld [vmem:[%s3 + $0x40] sm:$0xff]
  %v126 = vld [vmem:[%s3 + $0x48] sm:$0xff]
  %v127 = vld [vmem:[%s3 + $0x50] sm:$0xff]
  %v128 = vld [vmem:[%s3 + $0x58] sm:$0xff]
  %v129 = vld [vmem:[%s3 + $0x60] sm:$0xff]
  %v130 = vld [vmem:[%s3 + $0x68] sm:$0xff]
  %v131 = vld [vmem:[%s3 + $0x70] sm:$0xff]
  %v132 = vld [vmem:[%s3 + $0x78] sm:$0xff]
  %133 = vmatprep.subr.mxu0 0.0
  %134 = vmatpush1.msra.mxu0 %v132
  %135 = vmatprep.subr.mxu0 0.0
  %136 = vmatpush1.msra.mxu0 %v131
  %137 = vmatprep.subr.mxu0 0.0
  %138 = vmatpush1.msra.mxu0 %v130
  %139 = vmatprep.subr.mxu0 0.0
  %140 = vmatpush1.msra.mxu0 %v129
  %141 = vmatprep.subr.mxu0 0.0
  %142 = vmatpush1.msra.mxu0 %v128
  %143 = vmatprep.subr.mxu0 0.0
  %144 = vmatpush1.msra.mxu0 %v127
  %145 = vmatprep.subr.mxu0 0.0
  %146 = vmatpush1.msra.mxu0 %v126
  %147 = vmatprep.subr.mxu0 0.0
  %148 = vmatpush1.msra.mxu0 %v125
  %149 = vmatprep.subr.mxu0 0.0
  %150 = vmatpush1.msra.mxu0 %v124
  %151 = vmatprep.subr.mxu0 0.0
  %152 = vmatpush1.msra.mxu0 %v123
  %153 = vmatprep.subr.mxu0 0.0
  %154 = vmatpush1.msra.mxu0 %v122
  %155 = vmatprep.subr.mxu0 0.0
  %156 = vmatpush1.msra.mxu0 %v121
  %157 = vmatprep.subr.mxu0 0.0
  %158 = vmatpush1.msra.mxu0 %v120
  %159 = vmatprep.subr.mxu0 0.0
  %160 = vmatpush1.msra.mxu0 %v119
  %161 = vmatprep.subr.mxu0 0.0
  %162 = vmatpush1.msra.mxu0 %v118
  %163 = vmatprep.subr.mxu0 0.0
  %164 = vmatpush1.msra.mxu0 %v117
  %165 = vmatprep.subr.mxu0 0.0
  %166 = vmatpush2.msra.mxu0 0.0
  %167 = vmatprep.subr.mxu0 0.0
  %168 = vmatpush2.msra.mxu0 0.0
  %169 = vmatprep.subr.mxu0 0.0
  %170 = vmatpush2.msra.mxu0 0.0
  %171 = vmatprep.subr.mxu0 0.0
  %172 = vmatpush2.msra.mxu0 0.0
  %173 = vmatprep.subr.mxu0 0.0
  %174 = vmatpush2.msra.mxu0 0.0
  %175 = vmatprep.subr.mxu0 0.0
  %176 = vmatpush2.msra.mxu0 0.0
  %177 = vmatprep.subr.mxu0 0.0
  %178 = vmatpush2.msra.mxu0 0.0
  %179 = vmatprep.subr.mxu0 0.0
  %180 = vmatpush2.msra.mxu0 0.0
  %181 = vmatprep.subr.mxu0 0.0
  %182 = vmatpush2.msra.mxu0 0.0
  %183 = vmatprep.subr.mxu0 0.0
  %184 = vmatpush2.msra.mxu0 0.0
  %185 = vmatprep.subr.mxu0 0.0
  %186 = vmatpush2.msra.mxu0 0.0
  %187 = vmatprep.subr.mxu0 0.0
  %188 = vmatpush2.msra.mxu0 0.0
  %189 = vmatprep.subr.mxu0 0.0
  %190 = vmatpush2.msra.mxu0 0.0
  %191 = vmatprep.subr.mxu0 0.0
  %192 = vmatpush2.msra.mxu0 0.0
  %193 = vmatprep.subr.mxu0 0.0
  %194 = vmatpush2.msra.mxu0 0.0
  %195 = vmatprep.subr.mxu0 0.0
  %196 = vmatpush2.msra.mxu0 0.0
  %197 = vmatprep.mubr.f32.mxu0 0.0
  %198 = vmatmul.mubr.f32.gmra.mxu0 %v116
  %v199 = vpop.f32.mrf.mxu0
  %v200 = vadd.f32 0.0, %v199
  %v201 = vpop.f32.mrf.mxu0
  %202 = vdwg.mxu0
  %vm203 = vcmask 58368
  %204 = vst.msk [vmem:[%s4] sm:$0x3] %vm203, %v200
  // Predicated region
  $region18: #{sd1_forward.1} parent=0 // pred_check
    _
  $region19: #{sd1_forward.1} parent=0 // pred_check_branch
    %206 = sbr.rel (0) target = $region21
  $region20: #{sd1_forward.1} parent=0 // pred_region
    _
  $region21: #{sd1_forward.1} parent=0 // pred_fallthru
    _
  // Predicated region
  $region22: #{sd1_forward.1} parent=0 // pred_check
    _
  $region23: #{sd1_forward.1} parent=0 // pred_check_branch
    %208 = sbr.rel (0) target = $region25
  $region24: #{sd1_forward.1} parent=0 // pred_region
    _
  $region25: #{sd1_forward.1} parent=0 // pred_fallthru
    _

</llo_original>
